<compile_context>
chip_gen: v5e
topology: v5e:2x2
jax: 0.10.0
libtpu: 0.0.40
codegen_flags: <defaults>
</compile_context>

<pallas_src>
import functools

import jax
import jax.numpy as jnp
from jax.experimental import pallas as pl
from jax.experimental.pallas import tpu as pltpu

_NEG_F32 = -3.0e38  # effectively -inf for the masked max


def _round_up(v, m):
    return ((v + m - 1) // m) * m


def _markonv_kernel(p_ref, w_ref, lw_ref, lb_ref, out_ref, *,
                    kl1, rows_m, l_out, out_dim, out_pad):
    """One batch element per grid step.

    p_ref  : (1, R, 16)     bf16 consecutive-base pair features (zero-padded rows)
    w_ref  : (kl1, 16, N)   f32  length-gated Markov transition kernel
    lw_ref : (out_dim, N)   f32  linear weight (PyTorch layout)
    lb_ref : (1, out_dim)   f32  linear bias
    out_ref: (1, 1, out_pad) f32 lane-padded sigmoid(linear(maxpool(markonv(x))))
    """
    # Pair features are exact {0,1}; one cast to f32 for the MXU / f32 accumulate.
    p = p_ref[0].astype(jnp.float32)                     # (R, 16)

    n_kern = w_ref.shape[-1]
    acc = jnp.zeros((rows_m, n_kern), jnp.float32)
    # Markov convolution as kl1 accumulating (rows_m, 16) @ (16, N) matmuls over
    # shifted in-VMEM views — the im2col expansion never touches HBM.
    for k in range(kl1):                                 # static, small (K-1)
        acc = acc + jnp.dot(p[k:k + rows_m, :], w_ref[k],
                            preferred_element_type=jnp.float32)

    # Single masked max over the sequence axis (only padded tail rows masked).
    row = jax.lax.broadcasted_iota(jnp.int32, acc.shape, 0)
    pooled = jnp.max(jnp.where(row < l_out, acc, _NEG_F32),
                     axis=0, keepdims=True)              # (1, N)

    # Dropout(p=0.2) is identity in eval mode.
    lw = lw_ref[...]
    lb = lb_ref[...]
    if out_dim == 1:
        # VPU multiply + lane reduce; avoid an MXU push for a (1,N)@(N,1).
        logits = jnp.sum(pooled * lw, axis=-1, keepdims=True) + lb   # (1, 1)
    else:
        logits = jax.lax.dot_general(
            pooled, lw, (((1,), (1,)), ((), ())),
            preferred_element_type=jnp.float32) + lb                 # (1, out_dim)
    sig = jax.nn.sigmoid(logits)

    # Lane-dense store (out_pad is a multiple of 128); wrapper slices it back.
    if out_dim == out_pad:
        out_ref[0] = sig
    elif out_dim == 1:
        out_ref[0] = jnp.broadcast_to(sig, (1, out_pad))
    else:
        out_ref[0] = jnp.concatenate(
            [sig, jnp.zeros((1, out_pad - out_dim), jnp.float32)], axis=-1)


@functools.partial(jax.jit, static_argnames=("kernel_size",))
def markonv_v_model_forward(x, kernel, len_logits, lin_w, lin_b, *, kernel_size):
    """x: (B, 4, L) float32 one-hot (NCL).  Returns squeezed sigmoid outputs."""
    b, c, seq_len = x.shape
    assert c == 4
    kl1 = kernel_size - 1
    n_kern = kernel.shape[-1]
    out_dim = lin_w.shape[0]
    l_out = seq_len - kernel_size + 1
    assert l_out > 0, "sequence shorter than kernel"

    rows_m = _round_up(l_out, 8)                  # matmul M rows (sublane aligned)
    rows_p = _round_up(rows_m + kl1 - 1, 8)       # pair rows per batch (>= L-1)
    out_pad = _round_up(max(out_dim, 1), 128)     # lane-dense output width

    # ---- parameter prep (plain JAX glue) ----
    # MarkonvV soft length gate applied to the transition kernel (kept in f32).
    masked = kernel * jax.nn.sigmoid(len_logits)[:, None, None, :]   # (kl1,4,4,N)
    w3 = masked.reshape(kl1, 16, n_kern).astype(jnp.float32)

    # Compact pair features: P[b, t, i*4+j] = x[b, i, t] * x[b, j, t+1].
    # Values are exact {0,1}, so bf16 is lossless.  No im2col in HBM.
    pairs = jnp.einsum("bct,bdt->btcd", x[:, :, :-1], x[:, :, 1:])
    pairs = pairs.reshape(b, seq_len - 1, 16)
    pairs = jnp.pad(pairs, ((0, 0), (0, rows_p - (seq_len - 1)), (0, 0)))
    pairs = pairs.astype(jnp.bfloat16)                                # (B, R, 16)

    lw2 = lin_w.astype(jnp.float32)                                   # (out_dim, N)
    lb2 = lin_b.reshape(1, out_dim).astype(jnp.float32)

    kern = functools.partial(_markonv_kernel, kl1=kl1, rows_m=rows_m,
                             l_out=l_out, out_dim=out_dim, out_pad=out_pad)

    flops = b * (kl1 * 2 * rows_m * 16 * n_kern + 2 * n_kern * out_dim)
    bytes_accessed = (pairs.size * 2 + w3.size * 4 + lw2.size * 4 +
                      lb2.size * 4 + b * out_pad * 4)

    out = pl.pallas_call(
        kern,
        out_shape=jax.ShapeDtypeStruct((b, 1, out_pad), jnp.float32),
        grid_spec=pltpu.PrefetchScalarGridSpec(
            num_scalar_prefetch=0,
            grid=(b,),                              # one batch element per step
            in_specs=[
                pl.BlockSpec((1, rows_p, 16), lambda i: (i, 0, 0)),
                pl.BlockSpec((kl1, 16, n_kern), lambda i: (0, 0, 0)),
                pl.BlockSpec((out_dim, n_kern), lambda i: (0, 0)),
                pl.BlockSpec((1, out_dim), lambda i: (0, 0)),
            ],
            out_specs=pl.BlockSpec((1, 1, out_pad), lambda i: (i, 0, 0)),
        ),
        compiler_params=pltpu.CompilerParams(
            dimension_semantics=("parallel",)),     # megacore sharding on v7x
        cost_estimate=pl.CostEstimate(
            flops=flops, transcendentals=b * out_dim,
            bytes_accessed=bytes_accessed),
    )(pairs, w3, lw2, lb2)

    # Matches PyTorch's `.squeeze()` (removes all size-1 dims).
    return jnp.squeeze(out[:, 0, :out_dim])


def reference_forward(x, kernel, len_logits, lin_w, lin_b, kernel_size):
    """Pure-JAX reference mirroring the PyTorch module (eval mode), f32."""
    b, _, seq_len = x.shape
    kl1 = kernel_size - 1
    l_out = seq_len - kernel_size + 1
    masked = kernel * jax.nn.sigmoid(len_logits)[:, None, None, :]
    pairs = jnp.einsum("bct,bdt->btcd", x[:, :, :-1], x[:, :, 1:])   # (B,L-1,4,4)
    mar = jnp.zeros((b, l_out, masked.shape[-1]), jnp.float32)
    for k in range(kl1):
        mar = mar + jnp.einsum("btij,ijn->btn", pairs[:, k:k + l_out], masked[k])
    pooled = jnp.max(mar, axis=1)                                    # (B, N)
    logits = pooled @ lin_w.T + lin_b
    return jnp.squeeze(jax.nn.sigmoid(logits))


if __name__ == "__main__":
    # Small, deterministic setup.
    batch, seq_len = 2, 40
    kernel_size, number_of_kernel, outputdim = 8, 32, 1

    key = jax.random.PRNGKey(0)
    k_x, k_ker, k_len, k_lw, k_lb = jax.random.split(key, 5)

    # One-hot DNA-like input, NCL layout: (batch, 4, seq_len).
    bases = jax.random.randint(k_x, (batch, seq_len), 0, 4)
    x = jax.nn.one_hot(bases, 4, dtype=jnp.float32)                  # (B, L, 4)
    x = jnp.transpose(x, (0, 2, 1))                                  # (B, 4, L)

    # Deterministic synthetic parameters (shapes from MarkonvV / Linear).
    kernel = 0.1 * jax.random.normal(
        k_ker, (kernel_size - 1, 4, 4, number_of_kernel), jnp.float32)
    len_logits = jax.random.normal(
        k_len, (kernel_size - 1, number_of_kernel), jnp.float32)
    lin_w = 0.1 * jax.random.normal(
        k_lw, (outputdim, number_of_kernel), jnp.float32)
    lin_b = 0.1 * jax.random.normal(k_lb, (outputdim,), jnp.float32)

    out = markonv_v_model_forward(
        x, kernel, len_logits, lin_w, lin_b, kernel_size=kernel_size)
    out = jax.block_until_ready(out)

    ref = jax.block_until_ready(
        reference_forward(x, kernel, len_logits, lin_w, lin_b, kernel_size))

    assert out.shape == ref.shape, (out.shape, ref.shape)
    assert jnp.allclose(out, ref, atol=1e-3, rtol=1e-3), (out, ref)
    print("KERNEL_OK")
</pallas_src>

<mosaic_0001>
module attributes {stable_mosaic.version = 11 : i64} {
  func.func @_markonv_kernel(%arg0: i32, %arg1: memref<1x48x16xbf16, #tpu.memory_space<vmem>>, %arg2: memref<7x16x32xf32, #tpu.memory_space<vmem>>, %arg3: memref<1x32xf32, #tpu.memory_space<vmem>>, %arg4: memref<1x1xf32, #tpu.memory_space<vmem>>, %arg5: memref<1x1x128xf32, #tpu.memory_space<vmem>>) attributes {dimension_semantics = [#tpu.dimension_semantics<parallel>], iteration_bounds = array<i64: 2>, scalar_prefetch = 0 : i64, scratch_operands = 0 : i64, tpu.core_type = #tpu.core_type<tc>, window_params = [{transform_indices = @transform_0, window_bounds = array<i64: 1, 48, 16>}, {pipeline_mode = #tpu.pipeline_mode<synchronous>, transform_indices = @transform_1, window_bounds = array<i64: 7, 16, 32>}, {pipeline_mode = #tpu.pipeline_mode<synchronous>, transform_indices = @transform_2, window_bounds = array<i64: 1, 32>}, {pipeline_mode = #tpu.pipeline_mode<synchronous>, transform_indices = @transform_3, window_bounds = array<i64: 1, 1>}, {transform_indices = @transform_4, window_bounds = array<i64: 1, 1, 128>}]} {
    %c0 = arith.constant 0 : index
    %c0_0 = arith.constant 0 : index
    %c0_1 = arith.constant 0 : index
    %0 = vector.load %arg1[%c0, %c0_0, %c0_1] : memref<1x48x16xbf16, #tpu.memory_space<vmem>>, vector<1x48x16xbf16>
    %1 = vector.shape_cast %0 : vector<1x48x16xbf16> to vector<48x16xbf16>
    %2 = arith.extf %1 : vector<48x16xbf16> to vector<48x16xf32>
    %cst = arith.constant 0.000000e+00 : f32
    %3 = vector.broadcast %cst : f32 to vector<40x32xf32>
    %4 = vector.extract_strided_slice %2 {offsets = [0, 0], sizes = [40, 16], strides = [1, 1]} : vector<48x16xf32> to vector<40x16xf32>
    %c0_2 = arith.constant 0 : index
    %c0_3 = arith.constant 0 : index
    %c0_4 = arith.constant 0 : index
    %5 = vector.load %arg2[%c0_2, %c0_3, %c0_4] : memref<7x16x32xf32, #tpu.memory_space<vmem>>, vector<1x16x32xf32>
    %6 = vector.shape_cast %5 : vector<1x16x32xf32> to vector<16x32xf32>
    %cst_5 = arith.constant dense<0.000000e+00> : vector<40x32xf32>
    %7 = tpu.matmul %4, %6, %cst_5 {dimension_numbers = #tpu.dot_dimension_numbers<[1], [0], [0], [1], [0, 0, 1, 1], [], []>} : vector<40x16xf32>, vector<16x32xf32>, vector<40x32xf32> -> vector<40x32xf32>
    %8 = arith.addf %3, %7 : vector<40x32xf32>
    %9 = vector.extract_strided_slice %2 {offsets = [1, 0], sizes = [40, 16], strides = [1, 1]} : vector<48x16xf32> to vector<40x16xf32>
    %c1 = arith.constant 1 : index
    %c0_6 = arith.constant 0 : index
    %c0_7 = arith.constant 0 : index
    %10 = vector.load %arg2[%c1, %c0_6, %c0_7] : memref<7x16x32xf32, #tpu.memory_space<vmem>>, vector<1x16x32xf32>
    %11 = vector.shape_cast %10 : vector<1x16x32xf32> to vector<16x32xf32>
    %cst_8 = arith.constant dense<0.000000e+00> : vector<40x32xf32>
    %12 = tpu.matmul %9, %11, %cst_8 {dimension_numbers = #tpu.dot_dimension_numbers<[1], [0], [0], [1], [0, 0, 1, 1], [], []>} : vector<40x16xf32>, vector<16x32xf32>, vector<40x32xf32> -> vector<40x32xf32>
    %13 = arith.addf %8, %12 : vector<40x32xf32>
    %14 = vector.extract_strided_slice %2 {offsets = [2, 0], sizes = [40, 16], strides = [1, 1]} : vector<48x16xf32> to vector<40x16xf32>
    %c2 = arith.constant 2 : index
    %c0_9 = arith.constant 0 : index
    %c0_10 = arith.constant 0 : index
    %15 = vector.load %arg2[%c2, %c0_9, %c0_10] : memref<7x16x32xf32, #tpu.memory_space<vmem>>, vector<1x16x32xf32>
    %16 = vector.shape_cast %15 : vector<1x16x32xf32> to vector<16x32xf32>
    %cst_11 = arith.constant dense<0.000000e+00> : vector<40x32xf32>
    %17 = tpu.matmul %14, %16, %cst_11 {dimension_numbers = #tpu.dot_dimension_numbers<[1], [0], [0], [1], [0, 0, 1, 1], [], []>} : vector<40x16xf32>, vector<16x32xf32>, vector<40x32xf32> -> vector<40x32xf32>
    %18 = arith.addf %13, %17 : vector<40x32xf32>
    %19 = vector.extract_strided_slice %2 {offsets = [3, 0], sizes = [40, 16], strides = [1, 1]} : vector<48x16xf32> to vector<40x16xf32>
    %c3 = arith.constant 3 : index
    %c0_12 = arith.constant 0 : index
    %c0_13 = arith.constant 0 : index
    %20 = vector.load %arg2[%c3, %c0_12, %c0_13] : memref<7x16x32xf32, #tpu.memory_space<vmem>>, vector<1x16x32xf32>
    %21 = vector.shape_cast %20 : vector<1x16x32xf32> to vector<16x32xf32>
    %cst_14 = arith.constant dense<0.000000e+00> : vector<40x32xf32>
    %22 = tpu.matmul %19, %21, %cst_14 {dimension_numbers = #tpu.dot_dimension_numbers<[1], [0], [0], [1], [0, 0, 1, 1], [], []>} : vector<40x16xf32>, vector<16x32xf32>, vector<40x32xf32> -> vector<40x32xf32>
    %23 = arith.addf %18, %22 : vector<40x32xf32>
    %24 = vector.extract_strided_slice %2 {offsets = [4, 0], sizes = [40, 16], strides = [1, 1]} : vector<48x16xf32> to vector<40x16xf32>
    %c4 = arith.constant 4 : index
    %c0_15 = arith.constant 0 : index
    %c0_16 = arith.constant 0 : index
    %25 = vector.load %arg2[%c4, %c0_15, %c0_16] : memref<7x16x32xf32, #tpu.memory_space<vmem>>, vector<1x16x32xf32>
    %26 = vector.shape_cast %25 : vector<1x16x32xf32> to vector<16x32xf32>
    %cst_17 = arith.constant dense<0.000000e+00> : vector<40x32xf32>
    %27 = tpu.matmul %24, %26, %cst_17 {dimension_numbers = #tpu.dot_dimension_numbers<[1], [0], [0], [1], [0, 0, 1, 1], [], []>} : vector<40x16xf32>, vector<16x32xf32>, vector<40x32xf32> -> vector<40x32xf32>
    %28 = arith.addf %23, %27 : vector<40x32xf32>
    %29 = vector.extract_strided_slice %2 {offsets = [5, 0], sizes = [40, 16], strides = [1, 1]} : vector<48x16xf32> to vector<40x16xf32>
    %c5 = arith.constant 5 : index
    %c0_18 = arith.constant 0 : index
    %c0_19 = arith.constant 0 : index
    %30 = vector.load %arg2[%c5, %c0_18, %c0_19] : memref<7x16x32xf32, #tpu.memory_space<vmem>>, vector<1x16x32xf32>
    %31 = vector.shape_cast %30 : vector<1x16x32xf32> to vector<16x32xf32>
    %cst_20 = arith.constant dense<0.000000e+00> : vector<40x32xf32>
    %32 = tpu.matmul %29, %31, %cst_20 {dimension_numbers = #tpu.dot_dimension_numbers<[1], [0], [0], [1], [0, 0, 1, 1], [], []>} : vector<40x16xf32>, vector<16x32xf32>, vector<40x32xf32> -> vector<40x32xf32>
    %33 = arith.addf %28, %32 : vector<40x32xf32>
    %34 = vector.extract_strided_slice %2 {offsets = [6, 0], sizes = [40, 16], strides = [1, 1]} : vector<48x16xf32> to vector<40x16xf32>
    %c6 = arith.constant 6 : index
    %c0_21 = arith.constant 0 : index
    %c0_22 = arith.constant 0 : index
    %35 = vector.load %arg2[%c6, %c0_21, %c0_22] : memref<7x16x32xf32, #tpu.memory_space<vmem>>, vector<1x16x32xf32>
    %36 = vector.shape_cast %35 : vector<1x16x32xf32> to vector<16x32xf32>
    %cst_23 = arith.constant dense<0.000000e+00> : vector<40x32xf32>
    %37 = tpu.matmul %34, %36, %cst_23 {dimension_numbers = #tpu.dot_dimension_numbers<[1], [0], [0], [1], [0, 0, 1, 1], [], []>} : vector<40x16xf32>, vector<16x32xf32>, vector<40x32xf32> -> vector<40x32xf32>
    %38 = arith.addf %33, %37 : vector<40x32xf32>
    %39 = tpu.iota {dimensions = array<i32: 0>} : vector<40x32xi32>
    %c33_i32 = arith.constant 33 : i32
    %40 = vector.broadcast %c33_i32 : i32 to vector<40x32xi32>
    %41 = arith.cmpi slt, %39, %40 : vector<40x32xi32>
    %cst_24 = arith.constant -3.000000e+38 : f32
    %42 = vector.broadcast %cst_24 : f32 to vector<40x32xf32>
    %43 = arith.select %41, %38, %42 : vector<40x32xi1>, vector<40x32xf32>
    %cst_25 = arith.constant dense<0xFF800000> : vector<32xf32>
    %44 = vector.multi_reduction <maximumf>, %43, %cst_25 [0] : vector<40x32xf32> to vector<32xf32>
    %45 = vector.shape_cast %44 : vector<32xf32> to vector<1x32xf32>
    %c0_26 = arith.constant 0 : index
    %c0_27 = arith.constant 0 : index
    %46 = vector.load %arg3[%c0_26, %c0_27] : memref<1x32xf32, #tpu.memory_space<vmem>>, vector<1x32xf32>
    %c0_28 = arith.constant 0 : index
    %c0_29 = arith.constant 0 : index
    %47 = vector.load %arg4[%c0_28, %c0_29] : memref<1x1xf32, #tpu.memory_space<vmem>>, vector<1x1xf32>
    %48 = arith.mulf %45, %46 : vector<1x32xf32>
    %cst_30 = arith.constant dense<0.000000e+00> : vector<1xf32>
    %49 = vector.multi_reduction <add>, %48, %cst_30 [1] : vector<1x32xf32> to vector<1xf32>
    %50 = vector.shape_cast %49 : vector<1xf32> to vector<1x1xf32>
    %51 = arith.addf %50, %47 : vector<1x1xf32>
    %52 = arith.negf %51 : vector<1x1xf32>
    %53 = math.exp %52 : vector<1x1xf32>
    %cst_31 = arith.constant 1.000000e+00 : f32
    %54 = vector.broadcast %cst_31 : f32 to vector<1x1xf32>
    %55 = arith.addf %54, %53 : vector<1x1xf32>
    %56 = arith.divf %54, %55 : vector<1x1xf32>
    %57 = vector.shape_cast %56 : vector<1x1xf32> to vector<1x1xf32>
    %58 = vector.broadcast %57 : vector<1x1xf32> to vector<1x128xf32>
    %c0_32 = arith.constant 0 : index
    %c0_33 = arith.constant 0 : index
    %c0_34 = arith.constant 0 : index
    %59 = vector.load %arg5[%c0_32, %c0_33, %c0_34] : memref<1x1x128xf32, #tpu.memory_space<vmem>>, vector<1x1x128xf32>
    %60 = vector.shape_cast %59 : vector<1x1x128xf32> to vector<1x128xf32>
    %61 = vector.shape_cast %58 : vector<1x128xf32> to vector<1x1x128xf32>
    tpu.vector_store %arg5[%c0_32, %c0_33, %c0_34], %61 {strides = array<i32>} : memref<1x1x128xf32, #tpu.memory_space<vmem>>, vector<1x1x128xf32>,
    return
  }
  func.func @transform_0(%arg0: i32) -> (i32, i32, i32) {
    %c0_i32 = arith.constant 0 : i32
    %c0_i32_0 = arith.constant 0 : i32
    %c0_i32_1 = arith.constant 0 : i32
    return %arg0, %c0_i32, %c0_i32_0 : i32, i32, i32
  }
  func.func @transform_1(%arg0: i32) -> (i32, i32, i32) {
    %c0_i32 = arith.constant 0 : i32
    %c0_i32_0 = arith.constant 0 : i32
    %c0_i32_1 = arith.constant 0 : i32
    %c0_i32_2 = arith.constant 0 : i32
    return %c0_i32, %c0_i32_0, %c0_i32_1 : i32, i32, i32
  }
  func.func @transform_2(%arg0: i32) -> (i32, i32) {
    %c0_i32 = arith.constant 0 : i32
    %c0_i32_0 = arith.constant 0 : i32
    %c0_i32_1 = arith.constant 0 : i32
    return %c0_i32, %c0_i32_0 : i32, i32
  }
  func.func @transform_3(%arg0: i32) -> (i32, i32) {
    %c0_i32 = arith.constant 0 : i32
    %c0_i32_0 = arith.constant 0 : i32
    %c0_i32_1 = arith.constant 0 : i32
    return %c0_i32, %c0_i32_0 : i32, i32
  }
  func.func @transform_4(%arg0: i32) -> (i32, i32, i32) {
    %c0_i32 = arith.constant 0 : i32
    %c0_i32_0 = arith.constant 0 : i32
    %c0_i32_1 = arith.constant 0 : i32
    return %arg0, %c0_i32, %c0_i32_0 : i32, i32, i32
  }
}

</mosaic_0001>

<llo_original>
// kernel: markonv_v_model_forward.1
$region0: #{markonv_v_model_forward.1}
  #allocation0 [shape = 'u32[]', space=smem, size = 0x4, offset = 0x4, fixed_abs, tag = 'smem constant byte address 0x4 - core index']
  #allocation1 [shape = 'u32[72,128]{1,0:T(1,128)}', space=vmem, size = 0x9000, scoped, tag = 'internal scratch']
  #allocation2 [shape = 'f32[1,1]{1,0:T(1,128)S(1)}', space=vmem, size = 0x200, scoped, tag = 'scoped memory for markonv_v_model_forward.1']
  %s0 = inlined_call_operand.vmem [shape: bf16[2,48,16], index: 0, kind: input, shape index: {}]
  %s1 = inlined_call_operand.vmem [shape: f32[7,16,32], index: 1, kind: input, shape index: {}]
  %s2 = inlined_call_operand.vmem [shape: f32[1,32], index: 2, kind: input, shape index: {}]
  %s3 = inlined_call_operand.<no memory space> [shape: f32[1,1], index: 3, kind: input, shape index: {}]
  %s4 = inlined_call_operand.vmem [shape: f32[2,1,128], index: 4, kind: output, shape index: {}]
  %s5 = sld [smem:[#allocation0]]
  $region49: #{markonv_v_model_forward.1} parent=0
    _
  %s7 = ssub.s32 1, %s5
  %s8 = scalar_select 0, %s7, %s5
  %v9 = vstv %s3
  %10 = vst [vmem:[#allocation2] sm:$0x1] %v9
  loop: start=0, step=1, limit=4
  $region2: #{markonv_v_model_forward.1} parent=0 // loop_pre_header
    _
  $region3: #{markonv_v_model_forward.1} parent=0 // loop_header
    %s12 = sphi 0, %s16
    %p13 = scmp.ge.s32.totalorder %s12, 4
    %s22 = sphi 0, %s24
    %s25 = sphi 0, %s22
    %s26 = sphi 0, %s25
    %s42 = sphi 0, %s26
    %s46 = sphi 0, %s46
    %s48 = sphi 0, %s46
    %s49 = sphi 0, %s48
    %s63 = sphi 0, %s49
    %s67 = sphi 0, %s67
    %s69 = sphi 0, %s67
    %s70 = sphi 0, %s69
    %s84 = sphi 0, %s70
    %s88 = sphi 0, %s88
    %s90 = sphi 0, %s88
    %s91 = sphi 0, %s90
    %s105 = sphi 0, %s91
    %s111 = sphi 0, %s113
    %s114 = sphi 0, %s111
    %s115 = sphi 0, %s114
    %s131 = sphi 0, %s115
  $region4: #{markonv_v_model_forward.1} parent=0 // loop_header_branch
    %15 = sbr.rel (%p13) target = $region8
  $region5: #{markonv_v_model_forward.1} parent=0 // loop_body
    %s17 = ssub.s32 %s12, 1
    %s18 = ssub.s32 %s12, 2
    %s19 = sadd.s32 %s12, 1
    %s20 = ssub.s32 %s12, %s19
    %p21 = scmp.eq.s32.totalorder %s20, 0
    %s23 = sadd.s32 %s22, 1
    %s24 = scalar_select %p21, %s22, %s23
    %p27 = pneg %p21
    %p28 = scmp.eq.s32.totalorder %s12, 1
    %p29 = por %p27, %p28
    %p30 = scmp.ne.s32.totalorder %s22, %s25
    %p31 = scmp.eq.s32.totalorder %s12, 0
    %p32 = por %p30, %p31
    %p33 = scmp.ne.s32.totalorder %s22, %s25
    %p34 = scmp.eq.s32.totalorder %s17, 1
    %p35 = por %p33, %p34
    %p36 = scmp.ne.s32.totalorder %s25, %s26
    %p37 = scmp.eq.s32.totalorder %s17, 0
    %p38 = por %p36, %p37
    %p39 = scmp.ne.s32.totalorder %s25, %s26
    %p40 = scmp.eq.s32.totalorder %s18, 1
    %p41 = por %p39, %p40
    %p43 = scmp.ne.s32.totalorder %s26, %s42
    %p44 = scmp.eq.s32.totalorder %s18, 0
    %p45 = por %p43, %p44
    %s47 = sadd.s32 %s46, 1
    %p50 = scmp.eq.s32.totalorder %s12, 1
    %p51 = scmp.ne.s32.totalorder %s46, %s48
    %p52 = scmp.eq.s32.totalorder %s12, 0
    %p53 = por %p51, %p52
    %p54 = scmp.ne.s32.totalorder %s46, %s48
    %p55 = scmp.eq.s32.totalorder %s17, 1
    %p56 = por %p54, %p55
    %p57 = scmp.ne.s32.totalorder %s48, %s49
    %p58 = scmp.eq.s32.totalorder %s17, 0
    %p59 = por %p57, %p58
    %p60 = scmp.ne.s32.totalorder %s48, %s49
    %p61 = scmp.eq.s32.totalorder %s18, 1
    %p62 = por %p60, %p61
    %p64 = scmp.ne.s32.totalorder %s49, %s63
    %p65 = scmp.eq.s32.totalorder %s18, 0
    %p66 = por %p64, %p65
    %s68 = sadd.s32 %s67, 1
    %p71 = scmp.eq.s32.totalorder %s12, 1
    %p72 = scmp.ne.s32.totalorder %s67, %s69
    %p73 = scmp.eq.s32.totalorder %s12, 0
    %p74 = por %p72, %p73
    %p75 = scmp.ne.s32.totalorder %s67, %s69
    %p76 = scmp.eq.s32.totalorder %s17, 1
    %p77 = por %p75, %p76
    %p78 = scmp.ne.s32.totalorder %s69, %s70
    %p79 = scmp.eq.s32.totalorder %s17, 0
    %p80 = por %p78, %p79
    %p81 = scmp.ne.s32.totalorder %s69, %s70
    %p82 = scmp.eq.s32.totalorder %s18, 1
    %p83 = por %p81, %p82
    %p85 = scmp.ne.s32.totalorder %s70, %s84
    %p86 = scmp.eq.s32.totalorder %s18, 0
    %p87 = por %p85, %p86
    %s89 = sadd.s32 %s88, 1
    %p92 = scmp.eq.s32.totalorder %s12, 1
    %p93 = scmp.ne.s32.totalorder %s88, %s90
    %p94 = scmp.eq.s32.totalorder %s12, 0
    %p95 = por %p93, %p94
    %p96 = scmp.ne.s32.totalorder %s88, %s90
    %p97 = scmp.eq.s32.totalorder %s17, 1
    %p98 = por %p96, %p97
    %p99 = scmp.ne.s32.totalorder %s90, %s91
    %p100 = scmp.eq.s32.totalorder %s17, 0
    %p101 = por %p99, %p100
    %p102 = scmp.ne.s32.totalorder %s90, %s91
    %p103 = scmp.eq.s32.totalorder %s18, 1
    %p104 = por %p102, %p103
    %p106 = scmp.ne.s32.totalorder %s91, %s105
    %p107 = scmp.eq.s32.totalorder %s18, 0
    %p108 = por %p106, %p107
    %s109 = ssub.s32 %s12, %s19
    %p110 = scmp.eq.s32.totalorder %s109, 0
    %s112 = sadd.s32 %s111, 1
    %s113 = scalar_select %p110, %s111, %s112
    %p116 = pneg %p110
    %p117 = scmp.eq.s32.totalorder %s12, 1
    %p118 = por %p116, %p117
    %p119 = scmp.ne.s32.totalorder %s111, %s114
    %p120 = scmp.eq.s32.totalorder %s12, 0
    %p121 = por %p119, %p120
    %p122 = scmp.ne.s32.totalorder %s111, %s114
    %p123 = scmp.eq.s32.totalorder %s17, 1
    %p124 = por %p122, %p123
    %p125 = scmp.ne.s32.totalorder %s114, %s115
    %p126 = scmp.eq.s32.totalorder %s17, 0
    %p127 = por %p125, %p126
    %p128 = scmp.ne.s32.totalorder %s114, %s115
    %p129 = scmp.eq.s32.totalorder %s18, 1
    %p130 = por %p128, %p129
    %p132 = scmp.ne.s32.totalorder %s115, %s131
    %p133 = scmp.eq.s32.totalorder %s18, 0
    %p134 = por %p132, %p133
    %p135 = scmp.le.s32.totalorder 1, %s12
    %p136 = scmp.lt.s32.totalorder %s12, 3
    %p137 = pnand %p135, %p136
    %p138 = pneg %p137
    // Predicated region
    $region9: #{markonv_v_model_forward.1} parent=5 // pred_check
      _
    $region10: #{markonv_v_model_forward.1} parent=5 // pred_check_branch
      %140 = sbr.rel (%p137) target = $region12
    $region11: #{markonv_v_model_forward.1} parent=5 // pred_region
      %s141 = ssub.s32 %s12, 1
      // Predicated region
      $region13: #{markonv_v_model_forward.1} parent=11 // pred_check
        %p142 = pneg %p59
      $region14: #{markonv_v_model_forward.1} parent=11 // pred_check_branch
        %144 = sbr.rel (%p142) target = $region16
      $region15: #{markonv_v_model_forward.1} parent=11 // pred_region
        _
      $region16: #{markonv_v_model_forward.1} parent=11 // pred_fallthru
        _
      // Predicated region
      $region17: #{markonv_v_model_forward.1} parent=11 // pred_check
        %p145 = pneg %p80
      $region18: #{markonv_v_model_forward.1} parent=11 // pred_check_branch
        %147 = sbr.rel (%p145) target = $region20
      $region19: #{markonv_v_model_forward.1} parent=11 // pred_region
        _
      $region20: #{markonv_v_model_forward.1} parent=11 // pred_fallthru
        _
      // Predicated region
      $region21: #{markonv_v_model_forward.1} parent=11 // pred_check
        %p148 = pneg %p101
      $region22: #{markonv_v_model_forward.1} parent=11 // pred_check_branch
        %150 = sbr.rel (%p148) target = $region24
      $region23: #{markonv_v_model_forward.1} parent=11 // pred_region
        _
      $region24: #{markonv_v_model_forward.1} parent=11 // pred_fallthru
        _
    $region12: #{markonv_v_model_forward.1} parent=5 // pred_fallthru
      _
    %p151 = scmp.lt.s32.totalorder %s12, 2
    // Predicated region
    $region25: #{markonv_v_model_forward.1} parent=5 // pred_check
      %p152 = pneg %p151
    $region26: #{markonv_v_model_forward.1} parent=5 // pred_check_branch
      %154 = sbr.rel (%p152) target = $region28
    $region27: #{markonv_v_model_forward.1} parent=5 // pred_region
      // Predicated region
      $region29: #{markonv_v_model_forward.1} parent=27 // pred_check
        %p155 = pneg %p32
      $region30: #{markonv_v_model_forward.1} parent=27 // pred_check_branch
        %157 = sbr.rel (%p155) target = $region32
      $region31: #{markonv_v_model_forward.1} parent=27 // pred_region
        %p158 = scmp.lt.s32.totalorder %s12, 1
        %s159 = scalar_select %p158, %s12, 1
        %s160 = smul.addr %s159, 6
        %s161 = smul.addr %s160, 4
        %s162 = scalar_lea.vmem %s0, %s161
      $region32: #{markonv_v_model_forward.1} parent=27 // pred_fallthru
        _
    $region28: #{markonv_v_model_forward.1} parent=5 // pred_fallthru
      _
    %p163 = scmp.le.s32.totalorder 1, %s12
    %p164 = scmp.lt.s32.totalorder %s12, 3
    %p165 = pnand %p163, %p164
    %p166 = pneg %p165
    // Predicated region
    $region33: #{markonv_v_model_forward.1} parent=5 // pred_check
      _
    $region34: #{markonv_v_model_forward.1} parent=5 // pred_check_branch
      %168 = sbr.rel (%p165) target = $region36
    $region35: #{markonv_v_model_forward.1} parent=5 // pred_region
      %s169 = ssub.s32 %s12, 1
      %p170 = scmp.lt.s32.totalorder %s17, 1
      %s171 = scalar_select %p170, %s17, 1
      %s172 = smul.addr %s171, 6
      %s173 = smul.addr %s172, 4
      %s174 = scalar_lea.vmem %s0, %s173
      %p175 = pneg %p38
      %p176 = pneg %p35
      %p177 = pneg %p59
      %p178 = pneg %p56
      %p179 = pneg %p80
      %p180 = pneg %p77
      %p181 = pneg %p101
      %p182 = pneg %p98
      %p183 = pneg %p127
      %p184 = pneg %p124
      %p185 = scmp.lt.s32.totalorder %s17, 1
      %s186 = scalar_select %p185, %s17, 1
      %s187 = scalar_lea.vmem %s4, %s186
      %p188 = scmp.lt.s32.totalorder %s17, 1
      %s189 = scalar_select %p188, %s17, 1
      %s190 = smul.addr %s189, 6
      %s191 = smul.addr %s190, 4
      %s192 = scalar_lea.vmem %s0, %s191
      %p193 = scmp.lt.s32.totalorder %s17, 1
      %s194 = scalar_select %p193, %s17, 1
      %s195 = scalar_lea.vmem %s4, %s194
      %v196 = vld [vmem:[%s192] sm:$0xf]
      %v197 = vld [vmem:[%s192 + $0x4] sm:$0xf]
      %v198 = vld [vmem:[%s192 + $0x8] sm:$0xf]
      %v199 = vld [vmem:[%s192 + $0xc] sm:$0xf]
      %v200 = vld [vmem:[%s192 + $0x10] sm:$0xf]
      %v201 = vld [vmem:[%s192 + $0x14] sm:$0xf]
      %v202 = vunpack.c.l.bf16 %v196
      %v203 = vunpack.c.l.bf16 %v197
      %v204 = vunpack.c.l.bf16 %v198
      %v205 = vunpack.c.l.bf16 %v199
      %v206 = vunpack.c.l.bf16 %v200
      %v207 = vunpack.c.l.bf16 %v201
      %v208 = vld [vmem:[%s1] sm:$0xff]
      %v209 = vld [vmem:[%s1 + $0x8] sm:$0xff]
      %s210 = scalar_lea.vmem %s1, 16
      %v211 = vld [vmem:[%s210] sm:$0xff]
      %v212 = vld [vmem:[%s210 + $0x8] sm:$0xff]
      %vm219 = vcmask 1046528
      %v220 = vrot.slane %v202, 1
      %v221 = vrot.slane %v203, 1
      %v222 = vsel %vm219, %v220, %v221
      %v223 = vrot.slane %v204, 1
      %v224 = vsel %vm219, %v221, %v223
      %v225 = vrot.slane %v205, 1
      %v226 = vsel %vm219, %v223, %v225
      %v227 = vrot.slane %v206, 1
      %v228 = vsel %vm219, %v225, %v227
      %v229 = vrot.slane %v207, 1
      %v230 = vsel %vm219, %v227, %v229
      %vm231 = vcmask 130048
      %v232 = vsel %vm231, %v222, 0
      %v234 = vsel %vm231, %v224, 0
      %v236 = vsel %vm231, %v226, 0
      %v238 = vsel %vm231, %v228, 0
      %v240 = vsel %vm231, %v230, 0
      %242 = vmatpush.msra.mxu0 0.0
      %243 = vmatpush.msra.mxu0 0.0
      %244 = vmatpush.msra.mxu0 0.0
      %245 = vmatpush.msra.mxu0 0.0
      %246 = vmatpush.msra.mxu0 0.0
      %247 = vmatpush.msra.mxu0 0.0
      %248 = vmatpush.msra.mxu0 0.0
      %249 = vmatpush.msra.mxu0 0.0
      %250 = vmatpush.msra.mxu0 0.0
      %251 = vmatpush.msra.mxu0 0.0
      %252 = vmatpush.msra.mxu0 0.0
      %253 = vmatpush.msra.mxu0 0.0
      %254 = vmatpush.msra.mxu0 0.0
      %255 = vmatpush.msra.mxu0 0.0
      %256 = vmatpush.msra.mxu0 %v212
      %257 = vmatpush.msra.mxu0 %v211
      %258 = vmatmul.f32.gmra.mxu0 %v232
      %v259 = vpop.f32.mrf.mxu0
      %v260 = vadd.f32 0.0, %v259
      %261 = vmatmul.f32.gmra.mxu0 %v234
      %v262 = vpop.f32.mrf.mxu0
      %v263 = vadd.f32 0.0, %v262
      %264 = vmatmul.f32.gmra.mxu0 %v236
      %v265 = vpop.f32.mrf.mxu0
      %v266 = vadd.f32 0.0, %v265
      %267 = vmatmul.f32.gmra.mxu0 %v238
      %v268 = vpop.f32.mrf.mxu0
      %v269 = vadd.f32 0.0, %v268
      %270 = vmatmul.f32.gmra.mxu0 %v240
      %v271 = vpop.f32.mrf.mxu0
      %v272 = vadd.f32 0.0, %v271
      %273 = vdwg.mxu0
      %v274 = vsel %vm231, %v202, 0
      %v276 = vsel %vm231, %v203, 0
      %v278 = vsel %vm231, %v204, 0
      %v280 = vsel %vm231, %v205, 0
      %v282 = vsel %vm231, %v206, 0
      %284 = vmatpush.msra.mxu0 0.0
      %285 = vmatpush.msra.mxu0 0.0
      %286 = vmatpush.msra.mxu0 0.0
      %287 = vmatpush.msra.mxu0 0.0
      %288 = vmatpush.msra.mxu0 0.0
      %289 = vmatpush.msra.mxu0 0.0
      %290 = vmatpush.msra.mxu0 0.0
      %291 = vmatpush.msra.mxu0 0.0
      %292 = vmatpush.msra.mxu0 0.0
      %293 = vmatpush.msra.mxu0 0.0
      %294 = vmatpush.msra.mxu0 0.0
      %295 = vmatpush.msra.mxu0 0.0
      %296 = vmatpush.msra.mxu0 0.0
      %297 = vmatpush.msra.mxu0 0.0
      %298 = vmatpush.msra.mxu0 %v209
      %299 = vmatpush.msra.mxu0 %v208
      %300 = vmatmul.f32.gmra.mxu0 %v274
      %v301 = vpop.f32.mrf.mxu0
      %v302 = vadd.f32 %v260, %v301
      %303 = vmatmul.f32.gmra.mxu0 %v276
      %v304 = vpop.f32.mrf.mxu0
      %v305 = vadd.f32 %v263, %v304
      %306 = vmatmul.f32.gmra.mxu0 %v278
      %v307 = vpop.f32.mrf.mxu0
      %v308 = vadd.f32 %v266, %v307
      %309 = vmatmul.f32.gmra.mxu0 %v280
      %v310 = vpop.f32.mrf.mxu0
      %v311 = vadd.f32 %v269, %v310
      %312 = vmatmul.f32.gmra.mxu0 %v282
      %v313 = vpop.f32.mrf.mxu0
      %v314 = vadd.f32 %v272, %v313
      %315 = vdwg.mxu0
      %s316 = scalar_lea.vmem %s1, 32
      %v317 = vld [vmem:[%s316] sm:$0xff]
      %v318 = vld [vmem:[%s316 + $0x8] sm:$0xff]
      %vm319 = vcmask 1045504
      %v320 = vrot.slane %v202, 2
      %v321 = vrot.slane %v203, 2
      %v322 = vsel %vm319, %v320, %v321
      %v323 = vrot.slane %v204, 2
      %v324 = vsel %vm319, %v321, %v323
      %v325 = vrot.slane %v205, 2
      %v326 = vsel %vm319, %v323, %v325
      %v327 = vrot.slane %v206, 2
      %v328 = vsel %vm319, %v325, %v327
      %v329 = vrot.slane %v207, 2
      %v330 = vsel %vm319, %v327, %v329
      %v331 = vsel %vm231, %v322, 0
      %v333 = vsel %vm231, %v324, 0
      %v335 = vsel %vm231, %v326, 0
      %v337 = vsel %vm231, %v328, 0
      %v339 = vsel %vm231, %v330, 0
      %341 = vmatpush.msra.mxu0 0.0
      %342 = vmatpush.msra.mxu0 0.0
      %343 = vmatpush.msra.mxu0 0.0
      %344 = vmatpush.msra.mxu0 0.0
      %345 = vmatpush.msra.mxu0 0.0
      %346 = vmatpush.msra.mxu0 0.0
      %347 = vmatpush.msra.mxu0 0.0
      %348 = vmatpush.msra.mxu0 0.0
      %349 = vmatpush.msra.mxu0 0.0
      %350 = vmatpush.msra.mxu0 0.0
      %351 = vmatpush.msra.mxu0 0.0
      %352 = vmatpush.msra.mxu0 0.0
      %353 = vmatpush.msra.mxu0 0.0
      %354 = vmatpush.msra.mxu0 0.0
      %355 = vmatpush.msra.mxu0 %v318
      %356 = vmatpush.msra.mxu0 %v317
      %357 = vmatmul.f32.gmra.mxu0 %v331
      %v358 = vpop.f32.mrf.mxu0
      %v359 = vadd.f32 0.0, %v358
      %360 = vmatmul.f32.gmra.mxu0 %v333
      %v361 = vpop.f32.mrf.mxu0
      %v362 = vadd.f32 0.0, %v361
      %363 = vmatmul.f32.gmra.mxu0 %v335
      %v364 = vpop.f32.mrf.mxu0
      %v365 = vadd.f32 0.0, %v364
      %366 = vmatmul.f32.gmra.mxu0 %v337
      %v367 = vpop.f32.mrf.mxu0
      %v368 = vadd.f32 0.0, %v367
      %369 = vmatmul.f32.gmra.mxu0 %v339
      %v370 = vpop.f32.mrf.mxu0
      %v371 = vadd.f32 0.0, %v370
      %372 = vdwg.mxu0
      %v373 = vadd.f32 %v302, %v359
      %v374 = vadd.f32 %v305, %v362
      %v375 = vadd.f32 %v308, %v365
      %v376 = vadd.f32 %v311, %v368
      %v377 = vadd.f32 %v314, %v371
      %s378 = scalar_lea.vmem %s1, 48
      %v379 = vld [vmem:[%s378] sm:$0xff]
      %v380 = vld [vmem:[%s378 + $0x8] sm:$0xff]
      %vm381 = vcmask 1044480
      %v382 = vrot.slane %v202, 3
      %v383 = vrot.slane %v203, 3
      %v384 = vsel %vm381, %v382, %v383
      %v385 = vrot.slane %v204, 3
      %v386 = vsel %vm381, %v383, %v385
      %v387 = vrot.slane %v205, 3
      %v388 = vsel %vm381, %v385, %v387
      %v389 = vrot.slane %v206, 3
      %v390 = vsel %vm381, %v387, %v389
      %v391 = vrot.slane %v207, 3
      %v392 = vsel %vm381, %v389, %v391
      %v393 = vsel %vm231, %v384, 0
      %v395 = vsel %vm231, %v386, 0
      %v397 = vsel %vm231, %v388, 0
      %v399 = vsel %vm231, %v390, 0
      %v401 = vsel %vm231, %v392, 0
      %403 = vmatpush.msra.mxu0 0.0
      %404 = vmatpush.msra.mxu0 0.0
      %405 = vmatpush.msra.mxu0 0.0
      %406 = vmatpush.msra.mxu0 0.0
      %407 = vmatpush.msra.mxu0 0.0
      %408 = vmatpush.msra.mxu0 0.0
      %409 = vmatpush.msra.mxu0 0.0
      %410 = vmatpush.msra.mxu0 0.0
      %411 = vmatpush.msra.mxu0 0.0
      %412 = vmatpush.msra.mxu0 0.0
      %413 = vmatpush.msra.mxu0 0.0
      %414 = vmatpush.msra.mxu0 0.0
      %415 = vmatpush.msra.mxu0 0.0
      %416 = vmatpush.msra.mxu0 0.0
      %417 = vmatpush.msra.mxu0 %v380
      %418 = vmatpush.msra.mxu0 %v379
      %419 = vmatmul.f32.gmra.mxu0 %v393
      %v420 = vpop.f32.mrf.mxu0
      %v421 = vadd.f32 0.0, %v420
      %422 = vmatmul.f32.gmra.mxu0 %v395
      %v423 = vpop.f32.mrf.mxu0
      %v424 = vadd.f32 0.0, %v423
      %425 = vmatmul.f32.gmra.mxu0 %v397
      %v426 = vpop.f32.mrf.mxu0
      %v427 = vadd.f32 0.0, %v426
      %428 = vmatmul.f32.gmra.mxu0 %v399
      %v429 = vpop.f32.mrf.mxu0
      %v430 = vadd.f32 0.0, %v429
      %431 = vmatmul.f32.gmra.mxu0 %v401
      %v432 = vpop.f32.mrf.mxu0
      %v433 = vadd.f32 0.0, %v432
      %434 = vdwg.mxu0
      %v435 = vadd.f32 %v373, %v421
      %v436 = vadd.f32 %v374, %v424
      %v437 = vadd.f32 %v375, %v427
      %v438 = vadd.f32 %v376, %v430
      %v439 = vadd.f32 %v377, %v433
      %s440 = scalar_lea.vmem %s1, 64
      %v441 = vld [vmem:[%s440] sm:$0xff]
      %v442 = vld [vmem:[%s440 + $0x8] sm:$0xff]
      %vm443 = vcmask 1043456
      %v444 = vrot.slane %v202, 4
      %v445 = vrot.slane %v203, 4
      %v446 = vsel %vm443, %v444, %v445
      %v447 = vrot.slane %v204, 4
      %v448 = vsel %vm443, %v445, %v447
      %v449 = vrot.slane %v205, 4
      %v450 = vsel %vm443, %v447, %v449
      %v451 = vrot.slane %v206, 4
      %v452 = vsel %vm443, %v449, %v451
      %v453 = vrot.slane %v207, 4
      %v454 = vsel %vm443, %v451, %v453
      %v455 = vsel %vm231, %v446, 0
      %v457 = vsel %vm231, %v448, 0
      %v459 = vsel %vm231, %v450, 0
      %v461 = vsel %vm231, %v452, 0
      %v463 = vsel %vm231, %v454, 0
      %465 = vmatpush.msra.mxu0 0.0
      %466 = vmatpush.msra.mxu0 0.0
      %467 = vmatpush.msra.mxu0 0.0
      %468 = vmatpush.msra.mxu0 0.0
      %469 = vmatpush.msra.mxu0 0.0
      %470 = vmatpush.msra.mxu0 0.0
      %471 = vmatpush.msra.mxu0 0.0
      %472 = vmatpush.msra.mxu0 0.0
      %473 = vmatpush.msra.mxu0 0.0
      %474 = vmatpush.msra.mxu0 0.0
      %475 = vmatpush.msra.mxu0 0.0
      %476 = vmatpush.msra.mxu0 0.0
      %477 = vmatpush.msra.mxu0 0.0
      %478 = vmatpush.msra.mxu0 0.0
      %479 = vmatpush.msra.mxu0 %v442
      %480 = vmatpush.msra.mxu0 %v441
      %481 = vmatmul.f32.gmra.mxu0 %v455
      %v482 = vpop.f32.mrf.mxu0
      %v483 = vadd.f32 0.0, %v482
      %484 = vmatmul.f32.gmra.mxu0 %v457
      %v485 = vpop.f32.mrf.mxu0
      %v486 = vadd.f32 0.0, %v485
      %487 = vmatmul.f32.gmra.mxu0 %v459
      %v488 = vpop.f32.mrf.mxu0
      %v489 = vadd.f32 0.0, %v488
      %490 = vmatmul.f32.gmra.mxu0 %v461
      %v491 = vpop.f32.mrf.mxu0
      %v492 = vadd.f32 0.0, %v491
      %493 = vmatmul.f32.gmra.mxu0 %v463
      %v494 = vpop.f32.mrf.mxu0
      %v495 = vadd.f32 0.0, %v494
      %496 = vdwg.mxu0
      %v497 = vadd.f32 %v435, %v483
      %v498 = vadd.f32 %v436, %v486
      %v499 = vadd.f32 %v437, %v489
      %v500 = vadd.f32 %v438, %v492
      %v501 = vadd.f32 %v439, %v495
      %s502 = scalar_lea.vmem %s1, 80
      %v503 = vld [vmem:[%s502] sm:$0xff]
      %v504 = vld [vmem:[%s502 + $0x8] sm:$0xff]
      %vm505 = vcmask 1042432
      %v506 = vrot.slane %v202, 5
      %v507 = vrot.slane %v203, 5
      %v508 = vsel %vm505, %v506, %v507
      %v509 = vrot.slane %v204, 5
      %v510 = vsel %vm505, %v507, %v509
      %v511 = vrot.slane %v205, 5
      %v512 = vsel %vm505, %v509, %v511
      %v513 = vrot.slane %v206, 5
      %v514 = vsel %vm505, %v511, %v513
      %v515 = vrot.slane %v207, 5
      %v516 = vsel %vm505, %v513, %v515
      %v517 = vsel %vm231, %v508, 0
      %v519 = vsel %vm231, %v510, 0
      %v521 = vsel %vm231, %v512, 0
      %v523 = vsel %vm231, %v514, 0
      %v525 = vsel %vm231, %v516, 0
      %527 = vmatpush.msra.mxu0 0.0
      %528 = vmatpush.msra.mxu0 0.0
      %529 = vmatpush.msra.mxu0 0.0
      %530 = vmatpush.msra.mxu0 0.0
      %531 = vmatpush.msra.mxu0 0.0
      %532 = vmatpush.msra.mxu0 0.0
      %533 = vmatpush.msra.mxu0 0.0
      %534 = vmatpush.msra.mxu0 0.0
      %535 = vmatpush.msra.mxu0 0.0
      %536 = vmatpush.msra.mxu0 0.0
      %537 = vmatpush.msra.mxu0 0.0
      %538 = vmatpush.msra.mxu0 0.0
      %539 = vmatpush.msra.mxu0 0.0
      %540 = vmatpush.msra.mxu0 0.0
      %541 = vmatpush.msra.mxu0 %v504
      %542 = vmatpush.msra.mxu0 %v503
      %543 = vmatmul.f32.gmra.mxu0 %v517
      %v544 = vpop.f32.mrf.mxu0
      %v545 = vadd.f32 0.0, %v544
      %546 = vmatmul.f32.gmra.mxu0 %v519
      %v547 = vpop.f32.mrf.mxu0
      %v548 = vadd.f32 0.0, %v547
      %549 = vmatmul.f32.gmra.mxu0 %v521
      %v550 = vpop.f32.mrf.mxu0
      %v551 = vadd.f32 0.0, %v550
      %552 = vmatmul.f32.gmra.mxu0 %v523
      %v553 = vpop.f32.mrf.mxu0
      %v554 = vadd.f32 0.0, %v553
      %555 = vmatmul.f32.gmra.mxu0 %v525
      %v556 = vpop.f32.mrf.mxu0
      %v557 = vadd.f32 0.0, %v556
      %558 = vdwg.mxu0
      %v559 = vadd.f32 %v497, %v545
      %v560 = vadd.f32 %v498, %v548
      %v561 = vadd.f32 %v499, %v551
      %v562 = vadd.f32 %v500, %v554
      %v563 = vadd.f32 %v501, %v557
      %s564 = scalar_lea.vmem %s1, 96
      %v565 = vld [vmem:[%s564] sm:$0xff]
      %v566 = vld [vmem:[%s564 + $0x8] sm:$0xff]
      %vm567 = vcmask 1041408
      %v568 = vrot.slane %v202, 6
      %v569 = vrot.slane %v203, 6
      %v570 = vsel %vm567, %v568, %v569
      %v571 = vrot.slane %v204, 6
      %v572 = vsel %vm567, %v569, %v571
      %v573 = vrot.slane %v205, 6
      %v574 = vsel %vm567, %v571, %v573
      %v575 = vrot.slane %v206, 6
      %v576 = vsel %vm567, %v573, %v575
      %v577 = vrot.slane %v207, 6
      %v578 = vsel %vm567, %v575, %v577
      %v579 = vsel %vm231, %v570, 0
      %v581 = vsel %vm231, %v572, 0
      %v583 = vsel %vm231, %v574, 0
      %v585 = vsel %vm231, %v576, 0
      %v587 = vsel %vm231, %v578, 0
      %589 = vmatpush.msra.mxu0 0.0
      %590 = vmatpush.msra.mxu0 0.0
      %591 = vmatpush.msra.mxu0 0.0
      %592 = vmatpush.msra.mxu0 0.0
      %593 = vmatpush.msra.mxu0 0.0
      %594 = vmatpush.msra.mxu0 0.0
      %595 = vmatpush.msra.mxu0 0.0
      %596 = vmatpush.msra.mxu0 0.0
      %597 = vmatpush.msra.mxu0 0.0
      %598 = vmatpush.msra.mxu0 0.0
      %599 = vmatpush.msra.mxu0 0.0
      %600 = vmatpush.msra.mxu0 0.0
      %601 = vmatpush.msra.mxu0 0.0
      %602 = vmatpush.msra.mxu0 0.0
      %603 = vmatpush.msra.mxu0 %v566
      %604 = vmatpush.msra.mxu0 %v565
      %605 = vmatmul.f32.gmra.mxu0 %v579
      %v606 = vpop.f32.mrf.mxu0
      %v607 = vadd.f32 0.0, %v606
      %608 = vmatmul.f32.gmra.mxu0 %v581
      %v609 = vpop.f32.mrf.mxu0
      %v610 = vadd.f32 0.0, %v609
      %611 = vmatmul.f32.gmra.mxu0 %v583
      %v612 = vpop.f32.mrf.mxu0
      %v613 = vadd.f32 0.0, %v612
      %614 = vmatmul.f32.gmra.mxu0 %v585
      %v615 = vpop.f32.mrf.mxu0
      %v616 = vadd.f32 0.0, %v615
      %617 = vmatmul.f32.gmra.mxu0 %v587
      %v618 = vpop.f32.mrf.mxu0
      %v619 = vadd.f32 0.0, %v618
      %620 = vdwg.mxu0
      %v621 = vadd.f32 %v559, %v607
      %v622 = vadd.f32 %v560, %v610
      %v623 = vadd.f32 %v561, %v613
      %v624 = vadd.f32 %v562, %v616
      %v625 = vadd.f32 %v563, %v619
      %v626 = vlaneseq
      %v627 = vshrl.u32 %v626, 7
      %v628 = vadd.s32 %v627, 8
      %v629 = vadd.s32 %v627, 16
      %v630 = vadd.s32 %v627, 24
      %v631 = vadd.s32 %v627, 32
      %vm632 = vcmp.lt.s32.totalorder %v627, 33
      %vm633 = vcmp.lt.s32.totalorder %v628, 33
      %vm634 = vcmp.lt.s32.totalorder %v629, 33
      %vm635 = vcmp.lt.s32.totalorder %v630, 33
      %vm636 = vcmp.lt.s32.totalorder %v631, 33
      %v637 = vsel %vm632, %v621, -3e+38
      %v638 = vsel %vm633, %v622, -3e+38
      %v639 = vsel %vm634, %v623, -3e+38
      %v640 = vsel %vm635, %v624, -3e+38
      %v641 = vsel %vm636, %v625, -3e+38
      %vm642 = vcmask 261120
      %v643 = vsel %vm642, %v637, -inf
      %v644 = vsel %vm642, %v638, -inf
      %v645 = vsel %vm642, %v639, -inf
      %v646 = vsel %vm642, %v640, -inf
      %v647 = vsel %vm642, %v641, -inf
      %v648 = vmax.f32 %v643, %v647
      %v649 = vmax.f32 %v648, %v644
      %v650 = vmax.f32 %v645, %v646
      %v651 = vmax.f32 %v649, %v650
      %v652 = vrot.slane %v651, 4
      %v653 = vmax.f32 %v651, %v652
      %v654 = vrot.slane %v653, 2
      %v655 = vmax.f32 %v653, %v654
      %v656 = vrot.slane %v655, 1
      %v657 = vmax.f32 %v655, %v656
      %v658 = vld [vmem:[%s2] sm:$0x1]
      %v659 = vld [vmem:[#allocation2] sm:$0x1]
      %v660 = vmul.f32 %v657, %v658
      %vm661 = vcmask 253952
      %v662 = vsel %vm661, %v660, 0.0
      %663 = vadd.xlane.f32.xlu0 %v662
      %v664 = vpop.xlane.xlu0 %663
      %v665 = vadd.f32 %v664, %v659
      %v666 = vxor.u32 %v665, 2147483648
      %v667 = vmul.f32 %v666, 1.442695
      %v668 = vpow.pop %v667
      %v669 = vadd.f32 %v668, 1.0
      %v670 = vrcp.pop %v669
      %v671 = vmul.f32 %v669, %v670
      %v672 = vsub.f32 1.0, %v671
      %v673 = vmul.f32 %v670, %v672
      %v674 = vadd.f32 %v670, %v673
      %vm675 = vweird.f32 %v669
      %vm676 = vweird.f32 %v670
      %vm677 = vmor %vm675, %vm676
      %v678 = vsel %vm677, %v670, %v674
      %v679 = vand.u32 2147483647, %v669
      %vm680 = vcmp.eq.f32.partialorder %v679, 8.507059e+37
      %v681 = vand.u32 %v669, 2147483648
      %v682 = vor.u32 1.1754944e-38, %v681
      %v683 = vsel %vm680, %v682, %v678
      %v684 = vmul.f32 1.0, %v683
      %686 = vset.pattern.permute.xlu0 0
      %687 = vperm.xlu0 %686, %v684
      %v688 = vpop.permute.xlu0 %687
      %690 = vst [vmem:[%s195] sm:$0x1] %v688
      %p691 = scmp.lt.s32.totalorder %s17, 1
      %s692 = scalar_select %p691, %s17, 1
      %s693 = scalar_lea.vmem %s4, %s692
      // Predicated region
      $region37: #{markonv_v_model_forward.1} parent=35 // pred_check
        %p694 = pneg %p124
      $region38: #{markonv_v_model_forward.1} parent=35 // pred_check_branch
        %696 = sbr.rel (%p694) target = $region40
      $region39: #{markonv_v_model_forward.1} parent=35 // pred_region
        _
      $region40: #{markonv_v_model_forward.1} parent=35 // pred_fallthru
        _
    $region36: #{markonv_v_model_forward.1} parent=5 // pred_fallthru
      _
    %p697 = scmp.le.s32.totalorder 2, %s12
    // Predicated region
    $region41: #{markonv_v_model_forward.1} parent=5 // pred_check
      %p698 = pneg %p697
    $region42: #{markonv_v_model_forward.1} parent=5 // pred_check_branch
      %700 = sbr.rel (%p698) target = $region44
    $region43: #{markonv_v_model_forward.1} parent=5 // pred_region
      %s701 = ssub.s32 %s12, 2
      // Predicated region
      $region45: #{markonv_v_model_forward.1} parent=43 // pred_check
        %p702 = pneg %p130
      $region46: #{markonv_v_model_forward.1} parent=43 // pred_check_branch
        %704 = sbr.rel (%p702) target = $region48
      $region47: #{markonv_v_model_forward.1} parent=43 // pred_region
        %p705 = scmp.lt.s32.totalorder %s18, 1
        %s706 = scalar_select %p705, %s18, 1
        %s707 = scalar_lea.vmem %s4, %s706
      $region48: #{markonv_v_model_forward.1} parent=43 // pred_fallthru
        _
    $region44: #{markonv_v_model_forward.1} parent=5 // pred_fallthru
      _
  $region6: #{markonv_v_model_forward.1} parent=0 // loop_footer
    %s16 = sadd.s32 1, %s12
  $region7: #{markonv_v_model_forward.1} parent=0 // loop_footer_branch
    %11 = sbr.rel target = $region3
  $region8: #{markonv_v_model_forward.1} parent=0 // loop_exit
    _

</llo_original>
